<compile_context>
chip_gen: v6e
topology: v6e:2x2x1
jax: 0.10.0
libtpu: 0.0.40
codegen_flags: <defaults>
</compile_context>

<pallas_src>
import functools

import jax
import jax.numpy as jnp
from jax.experimental import pallas as pl
from jax.experimental.pallas import tpu as pltpu


def _round_up(x, m):
    return (x + m - 1) // m * m


def _actor_kernel(x_ref,
                  w1_ref, b1_ref,
                  w2_ref, b2_ref,
                  w3_ref, b3_ref,
                  w4_ref, b4_ref,
                  o_ref):
    """One batch tile of the MLP: x (TB, 2) f32 -> o (TB, 1) f32."""
    x = x_ref[...]                                            # (TB, 2) f32

    # ---- fc1 (2 -> 128): contraction dim 2 -> VPU broadcast-FMA, not MXU.
    w1 = w1_ref[...]                                          # (2, 128) f32
    h1 = x[:, 0:1] * w1[0:1, :] + x[:, 1:2] * w1[1:2, :] + b1_ref[...]
    h1 = jnp.maximum(h1, 0.0)                                 # (TB, 128) f32

    # ---- fc2 (128 -> 256): bf16 MXU matmul, f32 accumulate.
    h2 = jnp.dot(h1.astype(jnp.bfloat16), w2_ref[...],
                 preferred_element_type=jnp.float32)
    h2 = jnp.maximum(h2 + b2_ref[...], 0.0)                   # (TB, 256) f32

    # ---- fc3 (256 -> 128): bf16 MXU matmul, f32 accumulate.
    h3 = jnp.dot(h2.astype(jnp.bfloat16), w3_ref[...],
                 preferred_element_type=jnp.float32)
    h3 = jnp.maximum(h3 + b3_ref[...], 0.0)                   # (TB, 128) f32

    # ---- out (128 -> 1): N=1 -> VPU multiply + cross-lane reduce, not MXU.
    a = jnp.sum(h3 * w4_ref[...], axis=-1, keepdims=True) + b4_ref[...]
    o_ref[...] = jnp.tanh(a)                                  # (TB, 1) f32


@functools.partial(jax.jit, static_argnames=("tb",))
def mountaincar_actor(state, params, *, tb=512):
    """state: (B, 2) f32. params: (in,out)-layout weights, (1,out) biases."""
    B = state.shape[0]
    # Batch tile: multiple of 8 sublanes, capped at `tb` (multiple of 256).
    TB = min(tb, _round_up(B, 8))
    B_pad = _round_up(B, TB)

    x = state.astype(jnp.float32)
    if B_pad != B:
        x = jnp.pad(x, ((0, B_pad - B), (0, 0)))

    w1 = params["w1"].astype(jnp.float32)                   # (2, 128)
    b1 = params["b1"].astype(jnp.float32)                   # (1, 128)
    w2 = params["w2"].astype(jnp.bfloat16)                  # (128, 256)
    b2 = params["b2"].astype(jnp.float32)                   # (1, 256)
    w3 = params["w3"].astype(jnp.bfloat16)                  # (256, 128)
    b3 = params["b3"].astype(jnp.float32)                   # (1, 128)
    w4 = params["w4"].reshape(1, 128).astype(jnp.float32)   # (1, 128) row
    b4 = params["b4"].reshape(1, 1).astype(jnp.float32)     # (1, 1)

    def const(shape):
        return pl.BlockSpec(shape, lambda i: (0, 0))

    flops = 2 * B_pad * (2 * 128 + 128 * 256 + 256 * 128 + 128)
    bytes_accessed = (B_pad * 2 * 4 + B_pad * 1 * 4
                      + w1.size * 4 + b1.size * 4
                      + w2.size * 2 + b2.size * 4
                      + w3.size * 2 + b3.size * 4
                      + w4.size * 4 + b4.size * 4)

    out = pl.pallas_call(
        _actor_kernel,
        out_shape=jax.ShapeDtypeStruct((B_pad, 1), jnp.float32),
        grid=(B_pad // TB,),
        in_specs=[
            pl.BlockSpec((TB, 2), lambda i: (i, 0)),   # state tile
            const((2, 128)), const((1, 128)),          # fc1
            const((128, 256)), const((1, 256)),        # fc2
            const((256, 128)), const((1, 128)),        # fc3
            const((1, 128)), const((1, 1)),            # out
        ],
        out_specs=pl.BlockSpec((TB, 1), lambda i: (i, 0)),
        compiler_params=pltpu.CompilerParams(
            dimension_semantics=("parallel",)),
        cost_estimate=pl.CostEstimate(
            flops=flops, transcendentals=B_pad, bytes_accessed=bytes_accessed),
    )(x, w1, b1, w2, b2, w3, b3, w4, b4)
    return out[:B]


def init_params(key):
    """Deterministic init mimicking PyTorch Linear's U(-1/sqrt(fan_in), ...)."""
    dims = [(2, 128), (128, 256), (256, 128), (128, 1)]
    params = {}
    keys = jax.random.split(key, 2 * len(dims))
    for i, (fan_in, fan_out) in enumerate(dims):
        bound = 1.0 / jnp.sqrt(jnp.float32(fan_in))
        w = jax.random.uniform(keys[2 * i], (fan_in, fan_out),
                               minval=-bound, maxval=bound, dtype=jnp.float32)
        b = jax.random.uniform(keys[2 * i + 1], (1, fan_out),
                               minval=-bound, maxval=bound, dtype=jnp.float32)
        params[f"w{i + 1}"] = w
        params[f"b{i + 1}"] = b
    return params


def _reference_f32(state, params):
    """Pure-f32 reference (matches the PyTorch module numerics)."""
    x = jnp.maximum(state @ params["w1"] + params["b1"], 0.0)
    x = jnp.maximum(x @ params["w2"] + params["b2"], 0.0)
    x = jnp.maximum(x @ params["w3"] + params["b3"], 0.0)
    return jnp.tanh(x @ params["w4"] + params["b4"])


def _reference_kernel_numerics(state, params):
    """Reference mirroring the kernel's bf16-matmul / f32-accumulate path."""
    w1 = params["w1"]
    h1 = jnp.maximum(state[:, 0:1] * w1[0:1, :] + state[:, 1:2] * w1[1:2, :]
                     + params["b1"], 0.0)
    h2 = jnp.maximum(
        jnp.dot(h1.astype(jnp.bfloat16), params["w2"].astype(jnp.bfloat16),
                preferred_element_type=jnp.float32) + params["b2"], 0.0)
    h3 = jnp.maximum(
        jnp.dot(h2.astype(jnp.bfloat16), params["w3"].astype(jnp.bfloat16),
                preferred_element_type=jnp.float32) + params["b3"], 0.0)
    a = jnp.sum(h3 * params["w4"].reshape(1, 128), axis=-1, keepdims=True)
    return jnp.tanh(a + params["b4"].reshape(1, 1))


if __name__ == "__main__":
    key = jax.random.PRNGKey(0)
    pkey, xkey = jax.random.split(key)
    params = init_params(pkey)

    for B in (8, 37):  # 37 exercises the padded-tail path
        xk = jax.random.fold_in(xkey, B)
        state = jax.random.uniform(xk, (B, 2), minval=-1.0, maxval=1.0,
                                   dtype=jnp.float32)

        out = jax.block_until_ready(mountaincar_actor(state, params))
        assert out.shape == (B, 1)

        ref_exact = _reference_kernel_numerics(state, params)
        ref_f32 = _reference_f32(state, params)
        assert jnp.allclose(out, ref_exact, atol=1e-4, rtol=1e-4), (
            f"mismatch vs bf16-matched reference at B={B}")
        assert jnp.allclose(out, ref_f32, atol=2e-2, rtol=2e-2), (
            f"mismatch vs f32 reference at B={B}")

    print("KERNEL_OK")
</pallas_src>

<mosaic_0001>
module attributes {stable_mosaic.version = 11 : i64} {
  func.func @_actor_kernel(%arg0: i32, %arg1: memref<8x2xf32, #tpu.memory_space<vmem>>, %arg2: memref<2x128xf32, #tpu.memory_space<vmem>>, %arg3: memref<1x128xf32, #tpu.memory_space<vmem>>, %arg4: memref<128x256xbf16, #tpu.memory_space<vmem>>, %arg5: memref<1x256xf32, #tpu.memory_space<vmem>>, %arg6: memref<256x128xbf16, #tpu.memory_space<vmem>>, %arg7: memref<1x128xf32, #tpu.memory_space<vmem>>, %arg8: memref<1x128xf32, #tpu.memory_space<vmem>>, %arg9: memref<1x1xf32, #tpu.memory_space<vmem>>, %arg10: memref<8x1xf32, #tpu.memory_space<vmem>>) attributes {dimension_semantics = [#tpu.dimension_semantics<parallel>], iteration_bounds = array<i64: 1>, scalar_prefetch = 0 : i64, scratch_operands = 0 : i64, tpu.core_type = #tpu.core_type<tc>, window_params = [{transform_indices = @transform_0, window_bounds = array<i64: 8, 2>}, {pipeline_mode = #tpu.pipeline_mode<synchronous>, transform_indices = @transform_1, window_bounds = array<i64: 2, 128>}, {pipeline_mode = #tpu.pipeline_mode<synchronous>, transform_indices = @transform_2, window_bounds = array<i64: 1, 128>}, {pipeline_mode = #tpu.pipeline_mode<synchronous>, transform_indices = @transform_3, window_bounds = array<i64: 128, 256>}, {pipeline_mode = #tpu.pipeline_mode<synchronous>, transform_indices = @transform_4, window_bounds = array<i64: 1, 256>}, {pipeline_mode = #tpu.pipeline_mode<synchronous>, transform_indices = @transform_5, window_bounds = array<i64: 256, 128>}, {pipeline_mode = #tpu.pipeline_mode<synchronous>, transform_indices = @transform_6, window_bounds = array<i64: 1, 128>}, {pipeline_mode = #tpu.pipeline_mode<synchronous>, transform_indices = @transform_7, window_bounds = array<i64: 1, 128>}, {pipeline_mode = #tpu.pipeline_mode<synchronous>, transform_indices = @transform_8, window_bounds = array<i64: 1, 1>}, {transform_indices = @transform_9, window_bounds = array<i64: 8, 1>}]} {
    %c0 = arith.constant 0 : index
    %c0_0 = arith.constant 0 : index
    %0 = vector.load %arg1[%c0, %c0_0] : memref<8x2xf32, #tpu.memory_space<vmem>>, vector<8x2xf32>
    %c0_1 = arith.constant 0 : index
    %c0_2 = arith.constant 0 : index
    %1 = vector.load %arg2[%c0_1, %c0_2] : memref<2x128xf32, #tpu.memory_space<vmem>>, vector<2x128xf32>
    %2 = vector.extract_strided_slice %0 {offsets = [0, 0], sizes = [8, 1], strides = [1, 1]} : vector<8x2xf32> to vector<8x1xf32>
    %3 = vector.extract_strided_slice %1 {offsets = [0, 0], sizes = [1, 128], strides = [1, 1]} : vector<2x128xf32> to vector<1x128xf32>
    %4 = vector.broadcast %2 : vector<8x1xf32> to vector<8x128xf32>
    %5 = vector.broadcast %3 : vector<1x128xf32> to vector<8x128xf32>
    %6 = arith.mulf %4, %5 : vector<8x128xf32>
    %7 = vector.extract_strided_slice %0 {offsets = [0, 1], sizes = [8, 1], strides = [1, 1]} : vector<8x2xf32> to vector<8x1xf32>
    %8 = vector.extract_strided_slice %1 {offsets = [1, 0], sizes = [1, 128], strides = [1, 1]} : vector<2x128xf32> to vector<1x128xf32>
    %9 = vector.broadcast %7 : vector<8x1xf32> to vector<8x128xf32>
    %10 = vector.broadcast %8 : vector<1x128xf32> to vector<8x128xf32>
    %11 = arith.mulf %9, %10 : vector<8x128xf32>
    %12 = arith.addf %6, %11 : vector<8x128xf32>
    %c0_3 = arith.constant 0 : index
    %c0_4 = arith.constant 0 : index
    %13 = vector.load %arg3[%c0_3, %c0_4] : memref<1x128xf32, #tpu.memory_space<vmem>>, vector<1x128xf32>
    %14 = vector.broadcast %13 : vector<1x128xf32> to vector<8x128xf32>
    %15 = arith.addf %12, %14 : vector<8x128xf32>
    %cst = arith.constant 0.000000e+00 : f32
    %16 = vector.broadcast %cst : f32 to vector<8x128xf32>
    %17 = arith.maximumf %15, %16 : vector<8x128xf32>
    %18 = arith.truncf %17 : vector<8x128xf32> to vector<8x128xbf16>
    %c0_5 = arith.constant 0 : index
    %c0_6 = arith.constant 0 : index
    %19 = vector.load %arg4[%c0_5, %c0_6] : memref<128x256xbf16, #tpu.memory_space<vmem>>, vector<128x256xbf16>
    %cst_7 = arith.constant dense<0.000000e+00> : vector<8x256xf32>
    %20 = tpu.matmul %18, %19, %cst_7 {dimension_numbers = #tpu.dot_dimension_numbers<[1], [0], [0], [1], [0, 0, 1, 1], [], []>} : vector<8x128xbf16>, vector<128x256xbf16>, vector<8x256xf32> -> vector<8x256xf32>
    %c0_8 = arith.constant 0 : index
    %c0_9 = arith.constant 0 : index
    %21 = vector.load %arg5[%c0_8, %c0_9] : memref<1x256xf32, #tpu.memory_space<vmem>>, vector<1x256xf32>
    %22 = vector.broadcast %21 : vector<1x256xf32> to vector<8x256xf32>
    %23 = arith.addf %20, %22 : vector<8x256xf32>
    %cst_10 = arith.constant 0.000000e+00 : f32
    %24 = vector.broadcast %cst_10 : f32 to vector<8x256xf32>
    %25 = arith.maximumf %23, %24 : vector<8x256xf32>
    %26 = arith.truncf %25 : vector<8x256xf32> to vector<8x256xbf16>
    %c0_11 = arith.constant 0 : index
    %c0_12 = arith.constant 0 : index
    %27 = vector.load %arg6[%c0_11, %c0_12] : memref<256x128xbf16, #tpu.memory_space<vmem>>, vector<256x128xbf16>
    %cst_13 = arith.constant dense<0.000000e+00> : vector<8x128xf32>
    %28 = tpu.matmul %26, %27, %cst_13 {dimension_numbers = #tpu.dot_dimension_numbers<[1], [0], [0], [1], [0, 0, 1, 1], [], []>} : vector<8x256xbf16>, vector<256x128xbf16>, vector<8x128xf32> -> vector<8x128xf32>
    %c0_14 = arith.constant 0 : index
    %c0_15 = arith.constant 0 : index
    %29 = vector.load %arg7[%c0_14, %c0_15] : memref<1x128xf32, #tpu.memory_space<vmem>>, vector<1x128xf32>
    %30 = vector.broadcast %29 : vector<1x128xf32> to vector<8x128xf32>
    %31 = arith.addf %28, %30 : vector<8x128xf32>
    %cst_16 = arith.constant 0.000000e+00 : f32
    %32 = vector.broadcast %cst_16 : f32 to vector<8x128xf32>
    %33 = arith.maximumf %31, %32 : vector<8x128xf32>
    %c0_17 = arith.constant 0 : index
    %c0_18 = arith.constant 0 : index
    %34 = vector.load %arg8[%c0_17, %c0_18] : memref<1x128xf32, #tpu.memory_space<vmem>>, vector<1x128xf32>
    %35 = vector.broadcast %34 : vector<1x128xf32> to vector<8x128xf32>
    %36 = arith.mulf %33, %35 : vector<8x128xf32>
    %cst_19 = arith.constant dense<0.000000e+00> : vector<8xf32>
    %37 = vector.multi_reduction <add>, %36, %cst_19 [1] : vector<8x128xf32> to vector<8xf32>
    %38 = vector.shape_cast %37 : vector<8xf32> to vector<8x1xf32>
    %c0_20 = arith.constant 0 : index
    %c0_21 = arith.constant 0 : index
    %39 = vector.load %arg9[%c0_20, %c0_21] : memref<1x1xf32, #tpu.memory_space<vmem>>, vector<1x1xf32>
    %40 = vector.broadcast %39 : vector<1x1xf32> to vector<8x1xf32>
    %41 = arith.addf %38, %40 : vector<8x1xf32>
    %42 = math.tanh %41 : vector<8x1xf32>
    %c0_22 = arith.constant 0 : index
    %c0_23 = arith.constant 0 : index
    %43 = vector.load %arg10[%c0_22, %c0_23] : memref<8x1xf32, #tpu.memory_space<vmem>>, vector<8x1xf32>
    tpu.vector_store %arg10[%c0_22, %c0_23], %42 {strides = array<i32>} : memref<8x1xf32, #tpu.memory_space<vmem>>, vector<8x1xf32>,
    return
  }
  func.func @transform_0(%arg0: i32) -> (i32, i32) {
    %c0_i32 = arith.constant 0 : i32
    %c0_i32_0 = arith.constant 0 : i32
    return %arg0, %c0_i32 : i32, i32
  }
  func.func @transform_1(%arg0: i32) -> (i32, i32) {
    %c0_i32 = arith.constant 0 : i32
    %c0_i32_0 = arith.constant 0 : i32
    %c0_i32_1 = arith.constant 0 : i32
    return %c0_i32, %c0_i32_0 : i32, i32
  }
  func.func @transform_2(%arg0: i32) -> (i32, i32) {
    %c0_i32 = arith.constant 0 : i32
    %c0_i32_0 = arith.constant 0 : i32
    %c0_i32_1 = arith.constant 0 : i32
    return %c0_i32, %c0_i32_0 : i32, i32
  }
  func.func @transform_3(%arg0: i32) -> (i32, i32) {
    %c0_i32 = arith.constant 0 : i32
    %c0_i32_0 = arith.constant 0 : i32
    %c0_i32_1 = arith.constant 0 : i32
    return %c0_i32, %c0_i32_0 : i32, i32
  }
  func.func @transform_4(%arg0: i32) -> (i32, i32) {
    %c0_i32 = arith.constant 0 : i32
    %c0_i32_0 = arith.constant 0 : i32
    %c0_i32_1 = arith.constant 0 : i32
    return %c0_i32, %c0_i32_0 : i32, i32
  }
  func.func @transform_5(%arg0: i32) -> (i32, i32) {
    %c0_i32 = arith.constant 0 : i32
    %c0_i32_0 = arith.constant 0 : i32
    %c0_i32_1 = arith.constant 0 : i32
    return %c0_i32, %c0_i32_0 : i32, i32
  }
  func.func @transform_6(%arg0: i32) -> (i32, i32) {
    %c0_i32 = arith.constant 0 : i32
    %c0_i32_0 = arith.constant 0 : i32
    %c0_i32_1 = arith.constant 0 : i32
    return %c0_i32, %c0_i32_0 : i32, i32
  }
  func.func @transform_7(%arg0: i32) -> (i32, i32) {
    %c0_i32 = arith.constant 0 : i32
    %c0_i32_0 = arith.constant 0 : i32
    %c0_i32_1 = arith.constant 0 : i32
    return %c0_i32, %c0_i32_0 : i32, i32
  }
  func.func @transform_8(%arg0: i32) -> (i32, i32) {
    %c0_i32 = arith.constant 0 : i32
    %c0_i32_0 = arith.constant 0 : i32
    %c0_i32_1 = arith.constant 0 : i32
    return %c0_i32, %c0_i32_0 : i32, i32
  }
  func.func @transform_9(%arg0: i32) -> (i32, i32) {
    %c0_i32 = arith.constant 0 : i32
    %c0_i32_0 = arith.constant 0 : i32
    return %arg0, %c0_i32 : i32, i32
  }
}

</mosaic_0001>

<llo_original>
// kernel: mountaincar_actor.1
$region0: #{mountaincar_actor.1}
  #allocation0 [shape = 'u32[]', space=smem, size = 0x4, offset = 0x4, fixed_abs, tag = 'smem constant byte address 0x4 - core index']
  #allocation1 [shape = 'u32[144,128]{1,0:T(1,128)}', space=vmem, size = 0x12000, scoped, tag = 'internal scratch']
  #allocation2 [shape = 'f32[1,1]{1,0:T(1,128)S(1)}', space=vmem, size = 0x200, scoped, tag = 'scoped memory for mountaincar_actor.1']
  %s0 = inlined_call_operand.vmem [shape: f32[8,2], index: 0, kind: input, shape index: {}]
  %s1 = inlined_call_operand.vmem [shape: f32[2,128], index: 1, kind: input, shape index: {}]
  %s2 = inlined_call_operand.vmem [shape: f32[1,128], index: 2, kind: input, shape index: {}]
  %s3 = inlined_call_operand.vmem [shape: bf16[128,256], index: 3, kind: input, shape index: {}]
  %s4 = inlined_call_operand.vmem [shape: f32[1,256], index: 4, kind: input, shape index: {}]
  %s5 = inlined_call_operand.vmem [shape: bf16[256,128], index: 5, kind: input, shape index: {}]
  %s6 = inlined_call_operand.vmem [shape: f32[1,128], index: 6, kind: input, shape index: {}]
  %s7 = inlined_call_operand.vmem [shape: f32[1,128], index: 7, kind: input, shape index: {}]
  %s8 = inlined_call_operand.<no memory space> [shape: f32[1,1], index: 8, kind: input, shape index: {}]
  %s9 = inlined_call_operand.vmem [shape: f32[8,1], index: 9, kind: output, shape index: {}]
  %s10 = sld [smem:[#allocation0]]
  $region46: #{mountaincar_actor.1} parent=0
    _
  %s12 = ssub.s32 1, %s10
  %s13 = scalar_select 0, %s12, %s10
  %v14 = vstv %s8
  %15 = vst [vmem:[#allocation2] sm:$0x1] %v14
  // Predicated region
  $region2: #{mountaincar_actor.1} parent=0 // pred_check
    _
  $region3: #{mountaincar_actor.1} parent=0 // pred_check_branch
    %17 = sbr.rel (0) target = $region5
  $region4: #{mountaincar_actor.1} parent=0 // pred_region
    _
  $region5: #{mountaincar_actor.1} parent=0 // pred_fallthru
    _
  // Predicated region
  $region6: #{mountaincar_actor.1} parent=0 // pred_check
    _
  $region7: #{mountaincar_actor.1} parent=0 // pred_check_branch
    %19 = sbr.rel (0) target = $region9
  $region8: #{mountaincar_actor.1} parent=0 // pred_region
    _
  $region9: #{mountaincar_actor.1} parent=0 // pred_fallthru
    _
  // Predicated region
  $region10: #{mountaincar_actor.1} parent=0 // pred_check
    _
  $region11: #{mountaincar_actor.1} parent=0 // pred_check_branch
    %21 = sbr.rel (0) target = $region13
  $region12: #{mountaincar_actor.1} parent=0 // pred_region
    _
  $region13: #{mountaincar_actor.1} parent=0 // pred_fallthru
    _
  // Predicated region
  $region14: #{mountaincar_actor.1} parent=0 // pred_check
    _
  $region15: #{mountaincar_actor.1} parent=0 // pred_check_branch
    %23 = sbr.rel (0) target = $region17
  $region16: #{mountaincar_actor.1} parent=0 // pred_region
    _
  $region17: #{mountaincar_actor.1} parent=0 // pred_fallthru
    _
  // Predicated region
  $region18: #{mountaincar_actor.1} parent=0 // pred_check
    _
  $region19: #{mountaincar_actor.1} parent=0 // pred_check_branch
    %25 = sbr.rel (0) target = $region21
  $region20: #{mountaincar_actor.1} parent=0 // pred_region
    _
  $region21: #{mountaincar_actor.1} parent=0 // pred_fallthru
    _
  // Predicated region
  $region22: #{mountaincar_actor.1} parent=0 // pred_check
    _
  $region23: #{mountaincar_actor.1} parent=0 // pred_check_branch
    %27 = sbr.rel (0) target = $region25
  $region24: #{mountaincar_actor.1} parent=0 // pred_region
    _
  $region25: #{mountaincar_actor.1} parent=0 // pred_fallthru
    _
  // Predicated region
  $region26: #{mountaincar_actor.1} parent=0 // pred_check
    _
  $region27: #{mountaincar_actor.1} parent=0 // pred_check_branch
    %29 = sbr.rel (0) target = $region29
  $region28: #{mountaincar_actor.1} parent=0 // pred_region
    _
  $region29: #{mountaincar_actor.1} parent=0 // pred_fallthru
    _
  // Predicated region
  $region30: #{mountaincar_actor.1} parent=0 // pred_check
    _
  $region31: #{mountaincar_actor.1} parent=0 // pred_check_branch
    %31 = sbr.rel (0) target = $region33
  $region32: #{mountaincar_actor.1} parent=0 // pred_region
    _
  $region33: #{mountaincar_actor.1} parent=0 // pred_fallthru
    _
  // Predicated region
  $region34: #{mountaincar_actor.1} parent=0 // pred_check
    _
  $region35: #{mountaincar_actor.1} parent=0 // pred_check_branch
    %33 = sbr.rel (0) target = $region37
  $region36: #{mountaincar_actor.1} parent=0 // pred_region
    _
  $region37: #{mountaincar_actor.1} parent=0 // pred_fallthru
    _
  %v35 = vld [vmem:[%s0] sm:$0xff]
  %v36 = vld [vmem:[%s1] sm:$0x3]
  %38 = vset.pattern.permute.xlu0 0
  %39 = vperm.xlu0 %38, %v35
  %v40 = vpop.permute.xlu0 %39
  %v42 = vlaneseq
  %v43 = vshrl.u32 %v42, 7
  %v44 = vsub.s32 0, %v43
  %v45 = vrot.slane %v36, %v44
  %v46 = vmul.f32 %v40, %v45
  %47 = vset.pattern.permute.xlu0 1
  %48 = vperm.xlu0 %47, %v35
  %v49 = vpop.permute.xlu0 %48
  %v51 = vlaneseq
  %v52 = vshrl.u32 %v51, 7
  %v53 = vsub.s32 1, %v52
  %v54 = vrot.slane %v36, %v53
  %v55 = vmul.f32 %v49, %v54
  %v56 = vadd.f32 %v46, %v55
  %v57 = vld [vmem:[%s2] sm:$0x1]
  %v59 = vlaneseq
  %v60 = vshrl.u32 %v59, 7
  %v61 = vsub.s32 0, %v60
  %v62 = vrot.slane %v57, %v61
  %v64 = vadd.f32 %v56, %v62
  %v65 = vmax.f32 %v64, 0.0
  %v66 = vpack.c.bf16 %v65, %v65
  %v67 = vld [vmem:[%s3] sm:$0xff]
  %v68 = vld [vmem:[%s3 + $0x8] sm:$0xff]
  %v69 = vld [vmem:[%s3 + $0x10] sm:$0xff]
  %v70 = vld [vmem:[%s3 + $0x18] sm:$0xff]
  %v71 = vld [vmem:[%s3 + $0x20] sm:$0xff]
  %v72 = vld [vmem:[%s3 + $0x28] sm:$0xff]
  %v73 = vld [vmem:[%s3 + $0x30] sm:$0xff]
  %v74 = vld [vmem:[%s3 + $0x38] sm:$0xff]
  %v75 = vld [vmem:[%s3 + $0x40] sm:$0xff]
  %v76 = vld [vmem:[%s3 + $0x48] sm:$0xff]
  %v77 = vld [vmem:[%s3 + $0x50] sm:$0xff]
  %v78 = vld [vmem:[%s3 + $0x58] sm:$0xff]
  %v79 = vld [vmem:[%s3 + $0x60] sm:$0xff]
  %v80 = vld [vmem:[%s3 + $0x68] sm:$0xff]
  %v81 = vld [vmem:[%s3 + $0x70] sm:$0xff]
  %v82 = vld [vmem:[%s3 + $0x78] sm:$0xff]
  %v83 = vld [vmem:[%s4] sm:$0x3]
  %v85 = vlaneseq
  %v86 = vshrl.u32 %v85, 7
  %v87 = vsub.s32 0, %v86
  %v88 = vrot.slane %v83, %v87
  %v89 = vlaneseq
  %v90 = vshrl.u32 %v89, 7
  %v91 = vsub.s32 1, %v90
  %v92 = vrot.slane %v83, %v91
  %v111 = vunpack.c.l.b16 %v67
  %v112 = vunpack.c.h.b16 %v67
  %v113 = vunpack.c.l.b16 %v68
  %v114 = vunpack.c.h.b16 %v68
  %v115 = vunpack.c.l.b16 %v69
  %v116 = vunpack.c.h.b16 %v69
  %v117 = vunpack.c.l.b16 %v70
  %v118 = vunpack.c.h.b16 %v70
  %v119 = vunpack.c.l.b16 %v71
  %v120 = vunpack.c.h.b16 %v71
  %v121 = vunpack.c.l.b16 %v72
  %v122 = vunpack.c.h.b16 %v72
  %v123 = vunpack.c.l.b16 %v73
  %v124 = vunpack.c.h.b16 %v73
  %v125 = vunpack.c.l.b16 %v74
  %v126 = vunpack.c.h.b16 %v74
  %v127 = vunpack.c.l.b16 %v75
  %v128 = vunpack.c.h.b16 %v75
  %v129 = vunpack.c.l.b16 %v76
  %v130 = vunpack.c.h.b16 %v76
  %v131 = vunpack.c.l.b16 %v77
  %v132 = vunpack.c.h.b16 %v77
  %v133 = vunpack.c.l.b16 %v78
  %v134 = vunpack.c.h.b16 %v78
  %v135 = vunpack.c.l.b16 %v79
  %v136 = vunpack.c.h.b16 %v79
  %v137 = vunpack.c.l.b16 %v80
  %v138 = vunpack.c.h.b16 %v80
  %v139 = vunpack.c.l.b16 %v81
  %v140 = vunpack.c.h.b16 %v81
  %v141 = vunpack.c.l.b16 %v82
  %v142 = vunpack.c.h.b16 %v82
  %v143 = vpack.c.b16 %v113, %v111
  %v144 = vpack.c.b16 %v114, %v112
  %v145 = vpack.c.b16 %v117, %v115
  %v146 = vpack.c.b16 %v118, %v116
  %v147 = vpack.c.b16 %v121, %v119
  %v148 = vpack.c.b16 %v122, %v120
  %v149 = vpack.c.b16 %v125, %v123
  %v150 = vpack.c.b16 %v126, %v124
  %v151 = vpack.c.b16 %v129, %v127
  %v152 = vpack.c.b16 %v130, %v128
  %v153 = vpack.c.b16 %v133, %v131
  %v154 = vpack.c.b16 %v134, %v132
  %v155 = vpack.c.b16 %v137, %v135
  %v156 = vpack.c.b16 %v138, %v136
  %v157 = vpack.c.b16 %v141, %v139
  %v158 = vpack.c.b16 %v142, %v140
  %175 = vmatprep.subr.bf16.mxu0 %v158
  %176 = vmatpush1.bf16.msra.mxu0 %v157
  %177 = vmatprep.subr.bf16.mxu0 %v156
  %178 = vmatpush1.bf16.msra.mxu0 %v155
  %179 = vmatprep.subr.bf16.mxu0 %v154
  %180 = vmatpush1.bf16.msra.mxu0 %v153
  %181 = vmatprep.subr.bf16.mxu0 %v152
  %182 = vmatpush1.bf16.msra.mxu0 %v151
  %183 = vmatprep.subr.bf16.mxu0 %v150
  %184 = vmatpush1.bf16.msra.mxu0 %v149
  %185 = vmatprep.subr.bf16.mxu0 %v148
  %186 = vmatpush1.bf16.msra.mxu0 %v147
  %187 = vmatprep.subr.bf16.mxu0 %v146
  %188 = vmatpush1.bf16.msra.mxu0 %v145
  %189 = vmatprep.subr.bf16.mxu0 %v144
  %190 = vmatpush1.bf16.msra.mxu0 %v143
  %191 = vmatprep.subr.bf16.mxu0 0
  %192 = vmatpush2.bf16.msra.mxu0 0
  %193 = vmatprep.subr.bf16.mxu0 0
  %194 = vmatpush2.bf16.msra.mxu0 0
  %195 = vmatprep.subr.bf16.mxu0 0
  %196 = vmatpush2.bf16.msra.mxu0 0
  %197 = vmatprep.subr.bf16.mxu0 0
  %198 = vmatpush2.bf16.msra.mxu0 0
  %199 = vmatprep.subr.bf16.mxu0 0
  %200 = vmatpush2.bf16.msra.mxu0 0
  %201 = vmatprep.subr.bf16.mxu0 0
  %202 = vmatpush2.bf16.msra.mxu0 0
  %203 = vmatprep.subr.bf16.mxu0 0
  %204 = vmatpush2.bf16.msra.mxu0 0
  %205 = vmatprep.subr.bf16.mxu0 0
  %206 = vmatpush2.bf16.msra.mxu0 0
  %207 = vmatprep.mubr.bf16.mxu0 0
  %208 = vmatmul.mubr.bf16.gmra.mxu0 %v66
  %v209 = vpop.f32.mrf.mxu0
  %v210 = vadd.f32 %v88, %v209
  %v211 = vpop.f32.mrf.mxu0
  %v212 = vadd.f32 %v92, %v211
  %v213 = vpop.f32.mrf.mxu0
  %v214 = vpop.f32.mrf.mxu0
  %215 = vdwg.mxu0
  %v216 = vmax.f32 %v210, 0.0
  %v217 = vmax.f32 %v212, 0.0
  %v218 = vpack.c.bf16 %v216, %v216
  %v219 = vpack.c.bf16 %v217, %v217
  %v220 = vld [vmem:[%s5] sm:$0xf]
  %v221 = vld [vmem:[%s5 + $0x4] sm:$0xf]
  %v222 = vld [vmem:[%s5 + $0x8] sm:$0xf]
  %v223 = vld [vmem:[%s5 + $0xc] sm:$0xf]
  %v224 = vld [vmem:[%s5 + $0x10] sm:$0xf]
  %v225 = vld [vmem:[%s5 + $0x14] sm:$0xf]
  %v226 = vld [vmem:[%s5 + $0x18] sm:$0xf]
  %v227 = vld [vmem:[%s5 + $0x1c] sm:$0xf]
  %v228 = vld [vmem:[%s5 + $0x20] sm:$0xf]
  %v229 = vld [vmem:[%s5 + $0x24] sm:$0xf]
  %v230 = vld [vmem:[%s5 + $0x28] sm:$0xf]
  %v231 = vld [vmem:[%s5 + $0x2c] sm:$0xf]
  %v232 = vld [vmem:[%s5 + $0x30] sm:$0xf]
  %v233 = vld [vmem:[%s5 + $0x34] sm:$0xf]
  %v234 = vld [vmem:[%s5 + $0x38] sm:$0xf]
  %v235 = vld [vmem:[%s5 + $0x3c] sm:$0xf]
  %v236 = vld [vmem:[%s5 + $0x40] sm:$0xf]
  %v237 = vld [vmem:[%s5 + $0x44] sm:$0xf]
  %v238 = vld [vmem:[%s5 + $0x48] sm:$0xf]
  %v239 = vld [vmem:[%s5 + $0x4c] sm:$0xf]
  %v240 = vld [vmem:[%s5 + $0x50] sm:$0xf]
  %v241 = vld [vmem:[%s5 + $0x54] sm:$0xf]
  %v242 = vld [vmem:[%s5 + $0x58] sm:$0xf]
  %v243 = vld [vmem:[%s5 + $0x5c] sm:$0xf]
  %v244 = vld [vmem:[%s5 + $0x60] sm:$0xf]
  %v245 = vld [vmem:[%s5 + $0x64] sm:$0xf]
  %v246 = vld [vmem:[%s5 + $0x68] sm:$0xf]
  %v247 = vld [vmem:[%s5 + $0x6c] sm:$0xf]
  %v248 = vld [vmem:[%s5 + $0x70] sm:$0xf]
  %v249 = vld [vmem:[%s5 + $0x74] sm:$0xf]
  %v250 = vld [vmem:[%s5 + $0x78] sm:$0xf]
  %v251 = vld [vmem:[%s5 + $0x7c] sm:$0xf]
  %v252 = vld [vmem:[%s6] sm:$0x1]
  %v254 = vlaneseq
  %v255 = vshrl.u32 %v254, 7
  %v256 = vsub.s32 0, %v255
  %v257 = vrot.slane %v252, %v256
  %v291 = vunpack.c.l.b16 %v220
  %v292 = vunpack.c.l.b16 %v221
  %v293 = vunpack.c.l.b16 %v222
  %v294 = vunpack.c.l.b16 %v223
  %v295 = vunpack.c.l.b16 %v224
  %v296 = vunpack.c.l.b16 %v225
  %v297 = vunpack.c.l.b16 %v226
  %v298 = vunpack.c.l.b16 %v227
  %v299 = vunpack.c.l.b16 %v228
  %v300 = vunpack.c.l.b16 %v229
  %v301 = vunpack.c.l.b16 %v230
  %v302 = vunpack.c.l.b16 %v231
  %v303 = vunpack.c.l.b16 %v232
  %v304 = vunpack.c.l.b16 %v233
  %v305 = vunpack.c.l.b16 %v234
  %v306 = vunpack.c.l.b16 %v235
  %v307 = vunpack.c.l.b16 %v236
  %v308 = vunpack.c.l.b16 %v237
  %v309 = vunpack.c.l.b16 %v238
  %v310 = vunpack.c.l.b16 %v239
  %v311 = vunpack.c.l.b16 %v240
  %v312 = vunpack.c.l.b16 %v241
  %v313 = vunpack.c.l.b16 %v242
  %v314 = vunpack.c.l.b16 %v243
  %v315 = vunpack.c.l.b16 %v244
  %v316 = vunpack.c.l.b16 %v245
  %v317 = vunpack.c.l.b16 %v246
  %v318 = vunpack.c.l.b16 %v247
  %v319 = vunpack.c.l.b16 %v248
  %v320 = vunpack.c.l.b16 %v249
  %v321 = vunpack.c.l.b16 %v250
  %v322 = vunpack.c.l.b16 %v251
  %v323 = vpack.c.b16 %v292, %v291
  %v324 = vpack.c.b16 %v294, %v293
  %v325 = vpack.c.b16 %v296, %v295
  %v326 = vpack.c.b16 %v298, %v297
  %v327 = vpack.c.b16 %v300, %v299
  %v328 = vpack.c.b16 %v302, %v301
  %v329 = vpack.c.b16 %v304, %v303
  %v330 = vpack.c.b16 %v306, %v305
  %v331 = vpack.c.b16 %v308, %v307
  %v332 = vpack.c.b16 %v310, %v309
  %v333 = vpack.c.b16 %v312, %v311
  %v334 = vpack.c.b16 %v314, %v313
  %v335 = vpack.c.b16 %v316, %v315
  %v336 = vpack.c.b16 %v318, %v317
  %v337 = vpack.c.b16 %v320, %v319
  %v338 = vpack.c.b16 %v322, %v321
  %355 = vmatprep.subr.bf16.mxu0 0
  %356 = vmatpush1.bf16.msra.mxu0 %v330
  %357 = vmatprep.subr.bf16.mxu0 0
  %358 = vmatpush1.bf16.msra.mxu0 %v329
  %359 = vmatprep.subr.bf16.mxu0 0
  %360 = vmatpush1.bf16.msra.mxu0 %v328
  %361 = vmatprep.subr.bf16.mxu0 0
  %362 = vmatpush1.bf16.msra.mxu0 %v327
  %363 = vmatprep.subr.bf16.mxu0 0
  %364 = vmatpush1.bf16.msra.mxu0 %v326
  %365 = vmatprep.subr.bf16.mxu0 0
  %366 = vmatpush1.bf16.msra.mxu0 %v325
  %367 = vmatprep.subr.bf16.mxu0 0
  %368 = vmatpush1.bf16.msra.mxu0 %v324
  %369 = vmatprep.subr.bf16.mxu0 0
  %370 = vmatpush1.bf16.msra.mxu0 %v323
  %371 = vmatprep.subr.bf16.mxu0 0
  %372 = vmatpush2.bf16.msra.mxu0 %v338
  %373 = vmatprep.subr.bf16.mxu0 0
  %374 = vmatpush2.bf16.msra.mxu0 %v337
  %375 = vmatprep.subr.bf16.mxu0 0
  %376 = vmatpush2.bf16.msra.mxu0 %v336
  %377 = vmatprep.subr.bf16.mxu0 0
  %378 = vmatpush2.bf16.msra.mxu0 %v335
  %379 = vmatprep.subr.bf16.mxu0 0
  %380 = vmatpush2.bf16.msra.mxu0 %v334
  %381 = vmatprep.subr.bf16.mxu0 0
  %382 = vmatpush2.bf16.msra.mxu0 %v333
  %383 = vmatprep.subr.bf16.mxu0 0
  %384 = vmatpush2.bf16.msra.mxu0 %v332
  %385 = vmatprep.subr.bf16.mxu0 0
  %386 = vmatpush2.bf16.msra.mxu0 %v331
  %387 = vmatprep.mubr.bf16.mxu0 %v219
  %388 = vmatmul.mubr.bf16.gmra.mxu0 %v218
  %v389 = vpop.f32.mrf.mxu0
  %v390 = vadd.f32 %v257, %v389
  %v391 = vpop.f32.mrf.mxu0
  %v392 = vpop.f32.mrf.mxu0
  %v393 = vpop.f32.mrf.mxu0
  %394 = vdwg.mxu0
  %v395 = vmax.f32 %v390, 0.0
  %v396 = vld [vmem:[%s7] sm:$0x1]
  %v398 = vlaneseq
  %v399 = vshrl.u32 %v398, 7
  %v400 = vsub.s32 0, %v399
  %v401 = vrot.slane %v396, %v400
  %v403 = vmul.f32 %v395, %v401
  %404 = vadd.xlane.f32.xlu0 %v403
  %v405 = vpop.xlane.xlu0 %404
  %v406 = vld [vmem:[#allocation2] sm:$0x1]
  %v408 = vlaneseq
  %v409 = vshrl.u32 %v408, 7
  %v410 = vsub.s32 0, %v409
  %v411 = vrot.slane %v406, %v410
  %v413 = vadd.f32 %v405, %v411
  %v414 = vtanh.pop %v413
  %vm415 = vcmask 7168
  %416 = vst.msk [vmem:[%s9] sm:$0xff] %vm415, %v414
  // Predicated region
  $region38: #{mountaincar_actor.1} parent=0 // pred_check
    _
  $region39: #{mountaincar_actor.1} parent=0 // pred_check_branch
    %418 = sbr.rel (0) target = $region41
  $region40: #{mountaincar_actor.1} parent=0 // pred_region
    _
  $region41: #{mountaincar_actor.1} parent=0 // pred_fallthru
    _
  // Predicated region
  $region42: #{mountaincar_actor.1} parent=0 // pred_check
    _
  $region43: #{mountaincar_actor.1} parent=0 // pred_check_branch
    %420 = sbr.rel (0) target = $region45
  $region44: #{mountaincar_actor.1} parent=0 // pred_region
    _
  $region45: #{mountaincar_actor.1} parent=0 // pred_fallthru
    _

</llo_original>
